<compile_context>
chip_gen: v7x
topology: tpu7x:2x2x1
jax: 0.10.0
libtpu: 0.0.40
codegen_flags: <defaults>
</compile_context>

<pallas_src>
import functools

import jax
import jax.numpy as jnp
from jax.experimental import pallas as pl
from jax.experimental.pallas import tpu as pltpu

BN_EPS = 1e-5
LANE = 128
MAX_TILE_N = 4096                        # batch lanes per grid step (tiled path)
FUSED_VMEM_BUDGET = 20 * 1024 * 1024     # activation-footprint gate for fused path
VMEM_LIMIT_BYTES = 48 * 1024 * 1024      # < 64 MiB (v7x physical), > scoped defaults


def _round_up(n, m):
    return ((n + m - 1) // m) * m


# ---------------------------------------------------------------------------
# Fused single-kernel path (everything resident in VMEM).
# ---------------------------------------------------------------------------
def _bn_normalize(h, gamma, beta, mask, inv_n):
    """Training-mode BatchNorm1d over lanes (batch), biased var, two-pass."""
    if mask is None:
        mean = jnp.sum(h, axis=1, keepdims=True) * inv_n
        cen = h - mean
        var = jnp.sum(cen * cen, axis=1, keepdims=True) * inv_n
    else:
        mean = jnp.sum(jnp.where(mask, h, 0.0), axis=1, keepdims=True) * inv_n
        cen = jnp.where(mask, h - mean, 0.0)
        var = jnp.sum(cen * cen, axis=1, keepdims=True) * inv_n
    return (h - mean) * jax.lax.rsqrt(var + BN_EPS) * gamma + beta


def _fused_kernel(alpha_ref, x_ref,
                  w1_ref, b1_ref, g1_ref, be1_ref,
                  w2_ref, b2_ref,
                  g2_ref, be2_ref,
                  w3_ref, b3_ref, g3_ref, be3_ref,
                  w4_ref, b4_ref,
                  enc_ref, dec_ref,
                  *, n_valid, n_pad):
    mask = None
    if n_valid < n_pad:
        col = jax.lax.broadcasted_iota(jnp.int32, (1, n_pad), 1)
        mask = col < n_valid
    inv_n = 1.0 / n_valid

    a_enc = alpha_ref[0]
    a_dec = alpha_ref[1]

    x = x_ref[...]

    # encode: Linear(D,H) -> PReLU -> BN(H)
    h = jnp.dot(w1_ref[...], x, preferred_element_type=jnp.float32) + b1_ref[...]
    h = jnp.where(h >= 0.0, h, a_enc * h)
    h = _bn_normalize(h, g1_ref[...], be1_ref[...], mask, inv_n)

    # encode tail: Linear(H,E)  ->  `encoded`
    enc = jnp.dot(w2_ref[...], h, preferred_element_type=jnp.float32) + b2_ref[...]
    enc_ref[...] = enc.astype(enc_ref.dtype)

    # decode: BN(E) -> Linear(E,H) -> PReLU -> BN(H) -> Linear(H,D)
    e_n = _bn_normalize(enc, g2_ref[...], be2_ref[...], mask, inv_n)
    d = jnp.dot(w3_ref[...], e_n, preferred_element_type=jnp.float32) + b3_ref[...]
    d = jnp.where(d >= 0.0, d, a_dec * d)
    d = _bn_normalize(d, g3_ref[...], be3_ref[...], mask, inv_n)
    dec = jnp.dot(w4_ref[...], d, preferred_element_type=jnp.float32) + b4_ref[...]
    dec_ref[...] = dec.astype(dec_ref.dtype)


def _fused_forward(xT, params, n_valid):
    d_in, n_pad = xT.shape
    hidden = params["enc_w1"].shape[0]
    emb = params["enc_w2"].shape[0]

    def col(v):
        return v.reshape(-1, 1).astype(jnp.float32)

    alphas = jnp.concatenate(
        [params["enc_prelu_a"].reshape(-1)[:1],
         params["dec_prelu_a"].reshape(-1)[:1]]).astype(jnp.float32)

    args = [
        alphas, xT,
        params["enc_w1"].astype(jnp.float32), col(params["enc_b1"]),
        col(params["enc_bn_gamma"]), col(params["enc_bn_beta"]),
        params["enc_w2"].astype(jnp.float32), col(params["enc_b2"]),
        col(params["dec_bn1_gamma"]), col(params["dec_bn1_beta"]),
        params["dec_w1"].astype(jnp.float32), col(params["dec_b1"]),
        col(params["dec_bn2_gamma"]), col(params["dec_bn2_beta"]),
        params["dec_w2"].astype(jnp.float32), col(params["dec_b2"]),
    ]
    vmem = pl.BlockSpec(memory_space=pltpu.MemorySpace.VMEM)
    smem = pl.BlockSpec(memory_space=pltpu.MemorySpace.SMEM)
    in_specs = [smem] + [vmem] * (len(args) - 1)

    encT, decT = pl.pallas_call(
        functools.partial(_fused_kernel, n_valid=n_valid, n_pad=n_pad),
        in_specs=in_specs,
        out_specs=(vmem, vmem),
        out_shape=(jax.ShapeDtypeStruct((emb, n_pad), jnp.float32),
                   jax.ShapeDtypeStruct((d_in, n_pad), jnp.float32)),
        compiler_params=pltpu.CompilerParams(vmem_limit_bytes=VMEM_LIMIT_BYTES),
    )(*args)
    return encT, decT


# ---------------------------------------------------------------------------
# Tiled (large-batch) path: per-stage kernels, BN folded into the next Linear.
#   out = [PReLU](W @ x + b) ; optional per-tile partial sum/sumsq of `out`
#   written to lane-dense (c_out, 128) blocks and reduced outside the kernel.
# ---------------------------------------------------------------------------
def _stage_kernel(*refs, has_prelu, has_stats, needs_mask, n_valid, tile_n):
    idx = 0
    x_ref = refs[idx]; idx += 1
    w_ref = refs[idx]; idx += 1
    b_ref = refs[idx]; idx += 1
    a_ref = None
    if has_prelu:
        a_ref = refs[idx]; idx += 1
    out_ref = refs[idx]; idx += 1
    if has_stats:
        sum_ref, sq_ref = refs[idx], refs[idx + 1]

    h = jnp.dot(w_ref[...], x_ref[...], preferred_element_type=jnp.float32)
    h = h + b_ref[...]
    if has_prelu:
        a = a_ref[0]                              # PReLU scalar from SMEM
        h = jnp.where(h >= 0.0, h, a * h)

    out_ref[...] = h.astype(out_ref.dtype)

    if has_stats:
        c_out = out_ref.shape[0]
        hm = h
        if needs_mask:
            # Zero batch-padding lanes so they don't bias the BN statistics.
            i = pl.program_id(0)
            col = i * tile_n + jax.lax.broadcasted_iota(jnp.int32, (1, tile_n), 1)
            hm = jnp.where(col < n_valid, h, 0.0)
        ssum = jnp.sum(hm, axis=1, keepdims=True)
        ssq = jnp.sum(hm * hm, axis=1, keepdims=True)
        # Per-tile partials (lane-dense blocks); reduced outside the kernel so
        # the batch grid axis stays "parallel" (megacore-splittable on v7x).
        sum_ref[...] = jnp.broadcast_to(ssum, (c_out, LANE))
        sq_ref[...] = jnp.broadcast_to(ssq, (c_out, LANE))


def _run_stage(xT, w, b, prelu_a, *, has_stats, n_valid, tile_n):
    c_in, n_pad = xT.shape
    c_out = w.shape[0]
    num_tiles = n_pad // tile_n
    needs_mask = has_stats and (n_valid < n_pad)

    in_specs = [
        pl.BlockSpec((c_in, tile_n), lambda i: (0, i)),    # activation tile
        pl.BlockSpec((c_out, c_in), lambda i: (0, 0)),     # weight (resident)
        pl.BlockSpec((c_out, 1), lambda i: (0, 0)),        # bias   (resident)
    ]
    args = [xT, w.astype(jnp.float32), b.reshape(c_out, 1).astype(jnp.float32)]
    if prelu_a is not None:
        in_specs.append(pl.BlockSpec(memory_space=pltpu.MemorySpace.SMEM))
        args.append(prelu_a.reshape(-1)[:1].astype(jnp.float32))

    out_shape = [jax.ShapeDtypeStruct((c_out, n_pad), jnp.float32)]
    out_specs = [pl.BlockSpec((c_out, tile_n), lambda i: (0, i))]
    if has_stats:
        out_shape += [jax.ShapeDtypeStruct((c_out, num_tiles * LANE), jnp.float32)] * 2
        out_specs += [pl.BlockSpec((c_out, LANE), lambda i: (0, i))] * 2

    kernel = functools.partial(
        _stage_kernel, has_prelu=prelu_a is not None, has_stats=has_stats,
        needs_mask=needs_mask, n_valid=n_valid, tile_n=tile_n)

    outs = pl.pallas_call(
        kernel,
        grid=(num_tiles,),
        in_specs=in_specs,
        out_specs=tuple(out_specs),
        out_shape=tuple(out_shape),
        compiler_params=pltpu.CompilerParams(
            dimension_semantics=("parallel",),
            vmem_limit_bytes=VMEM_LIMIT_BYTES),
    )(*args)
    if not isinstance(outs, (tuple, list)):
        outs = (outs,)
    return outs


def _moments_from_partials(sum_p, sq_p, n):
    c_out = sum_p.shape[0]
    num_tiles = sum_p.shape[1] // LANE
    s = sum_p.reshape(c_out, num_tiles, LANE)[:, :, 0].sum(axis=1)
    q = sq_p.reshape(c_out, num_tiles, LANE)[:, :, 0].sum(axis=1)
    mean = s / n
    var = jnp.maximum(q / n - mean * mean, 0.0)   # single-pass, clamped
    return mean, var


def _fold_bn_into_linear(gamma, beta, mean, var, w, b):
    # Linear(BN(x)) == x @ (s*W)^T + (W @ t + b),  s = gamma*rsqrt(var+eps),
    # t = beta - mean*s   (per input feature of the Linear).
    s = gamma * jax.lax.rsqrt(var + BN_EPS)
    t = beta - mean * s
    return w * s[None, :], w @ t + b


def _tiled_forward(x, params, n, max_tile):
    # Pad the batch only to a 128 multiple; pick a tile that divides it so
    # padding waste is bounded by < num_tiles * 128 lanes.
    n_pad128 = _round_up(n, LANE)
    num_tiles = -(-n_pad128 // max_tile)
    tile_n = _round_up(-(-n_pad128 // num_tiles), LANE)
    n_pad = tile_n * num_tiles
    xT = jnp.pad(x.astype(jnp.float32).T, ((0, 0), (0, n_pad - n)))

    # encoder head: Linear(D,H) -> PReLU   (+ stats for BN(H))
    h1T, s1, q1 = _run_stage(xT, params["enc_w1"], params["enc_b1"],
                             params["enc_prelu_a"],
                             has_stats=True, n_valid=n, tile_n=tile_n)
    mu1, v1 = _moments_from_partials(s1, q1, n)
    w2f, b2f = _fold_bn_into_linear(params["enc_bn_gamma"], params["enc_bn_beta"],
                                    mu1, v1, params["enc_w2"], params["enc_b2"])

    # encoder tail: BN(H) folded into Linear(H,E)   (+ stats of `encoded`)
    encT, s2, q2 = _run_stage(h1T, w2f, b2f, None,
                              has_stats=True, n_valid=n, tile_n=tile_n)
    mu2, v2 = _moments_from_partials(s2, q2, n)
    w3f, b3f = _fold_bn_into_linear(params["dec_bn1_gamma"], params["dec_bn1_beta"],
                                    mu2, v2, params["dec_w1"], params["dec_b1"])

    # decoder head: BN(E)+Linear(E,H) -> PReLU   (+ stats for BN(H))
    d1T, s3, q3 = _run_stage(encT, w3f, b3f, params["dec_prelu_a"],
                             has_stats=True, n_valid=n, tile_n=tile_n)
    mu3, v3 = _moments_from_partials(s3, q3, n)
    w4f, b4f = _fold_bn_into_linear(params["dec_bn2_gamma"], params["dec_bn2_beta"],
                                    mu3, v3, params["dec_w2"], params["dec_b2"])

    # decoder tail: BN(H) folded into Linear(H,D), no trailing PReLU
    (decT,) = _run_stage(d1T, w4f, b4f, None,
                         has_stats=False, n_valid=n, tile_n=tile_n)
    return encT, decT


# ---------------------------------------------------------------------------
# Top-level forward.
# ---------------------------------------------------------------------------
def ae_forward(x, params, *, max_tile=MAX_TILE_N, fuse_budget=FUSED_VMEM_BUDGET):
    """x: (N, D_in) float32 -> (encoded (N, E), decoded (N, D_in))."""
    n, d_in = x.shape
    hidden = params["enc_w1"].shape[0]
    emb = params["enc_w2"].shape[0]

    n_pad = _round_up(n, LANE)
    # Rough all-in-VMEM activation footprint of the fused kernel.
    fused_bytes = 4 * n_pad * (2 * d_in + 3 * hidden + 2 * emb)
    if fused_bytes <= fuse_budget:
        xT = jnp.pad(x.astype(jnp.float32).T, ((0, 0), (0, n_pad - n)))
        encT, decT = _fused_forward(xT, params, n)
    else:
        encT, decT = _tiled_forward(x, params, n, max_tile)

    return encT[:, :n].T, decT[:, :n].T


ae_forward_jit = jax.jit(ae_forward)


# ---------------------------------------------------------------------------
# Pure-JAX reference matching PyTorch training-mode forward.
# ---------------------------------------------------------------------------
def _bn_train_ref(x, gamma, beta):
    mu = jnp.mean(x, axis=0, keepdims=True)
    var = jnp.mean((x - mu) ** 2, axis=0, keepdims=True)
    return (x - mu) * jax.lax.rsqrt(var + BN_EPS) * gamma + beta


def _prelu_ref(x, a):
    return jnp.where(x >= 0, x, a * x)


def ae_forward_ref(x, params):
    h = x @ params["enc_w1"].T + params["enc_b1"]
    h = _prelu_ref(h, params["enc_prelu_a"][0])
    h = _bn_train_ref(h, params["enc_bn_gamma"], params["enc_bn_beta"])
    encoded = h @ params["enc_w2"].T + params["enc_b2"]

    d = _bn_train_ref(encoded, params["dec_bn1_gamma"], params["dec_bn1_beta"])
    d = d @ params["dec_w1"].T + params["dec_b1"]
    d = _prelu_ref(d, params["dec_prelu_a"][0])
    d = _bn_train_ref(d, params["dec_bn2_gamma"], params["dec_bn2_beta"])
    decoded = d @ params["dec_w2"].T + params["dec_b2"]
    return encoded, decoded


def make_params(key, d_in, hidden, emb):
    ks = jax.random.split(key, 16)
    return {
        # encode: Linear(d_in,H) -> PReLU -> BN(H) -> Linear(H,E)
        "enc_w1": jax.random.normal(ks[0], (hidden, d_in), jnp.float32) * 0.2,
        "enc_b1": jax.random.normal(ks[1], (hidden,), jnp.float32) * 0.1,
        "enc_prelu_a": jnp.full((1,), 0.25, jnp.float32),          # PReLU default
        "enc_bn_gamma": 1.0 + 0.1 * jax.random.normal(ks[2], (hidden,), jnp.float32),
        "enc_bn_beta": 0.1 * jax.random.normal(ks[3], (hidden,), jnp.float32),
        "enc_w2": jax.random.normal(ks[4], (emb, hidden), jnp.float32) * 0.2,
        "enc_b2": jax.random.normal(ks[5], (emb,), jnp.float32) * 0.1,
        # decode: BN(E) -> Linear(E,H) -> PReLU -> BN(H) -> Linear(H,d_in)
        "dec_bn1_gamma": 1.0 + 0.1 * jax.random.normal(ks[6], (emb,), jnp.float32),
        "dec_bn1_beta": 0.1 * jax.random.normal(ks[7], (emb,), jnp.float32),
        "dec_w1": jax.random.normal(ks[8], (hidden, emb), jnp.float32) * 0.2,
        "dec_b1": jax.random.normal(ks[9], (hidden,), jnp.float32) * 0.1,
        "dec_prelu_a": jnp.full((1,), 0.25, jnp.float32),
        "dec_bn2_gamma": 1.0 + 0.1 * jax.random.normal(ks[10], (hidden,), jnp.float32),
        "dec_bn2_beta": 0.1 * jax.random.normal(ks[11], (hidden,), jnp.float32),
        "dec_w2": jax.random.normal(ks[12], (d_in, hidden), jnp.float32) * 0.2,
        "dec_b2": jax.random.normal(ks[13], (d_in,), jnp.float32) * 0.1,
    }


if __name__ == "__main__":
    # AE(input_dimension=32, hidden_layer_size=32, hidden_layers=1,
    #    embedding_dimension=16)
    D_IN, HIDDEN, EMB = 32, 32, 16

    key = jax.random.PRNGKey(0)
    pkey, xkey1, xkey2 = jax.random.split(key, 3)
    params = make_params(pkey, D_IN, HIDDEN, EMB)

    # --- Test 1: shipped small batch -> fully fused single-kernel path ---
    x1 = jax.random.normal(xkey1, (16, D_IN), jnp.float32)
    enc1, dec1 = jax.block_until_ready(ae_forward_jit(x1, params))
    er1, dr1 = ae_forward_ref(x1, params)
    assert enc1.shape == (16, EMB), enc1.shape
    assert dec1.shape == (16, D_IN), dec1.shape
    assert jnp.allclose(enc1, er1, atol=1e-4, rtol=1e-4), \
        float(jnp.max(jnp.abs(enc1 - er1)))
    assert jnp.allclose(dec1, dr1, atol=1e-4, rtol=1e-4), \
        float(jnp.max(jnp.abs(dec1 - dr1)))

    # --- Test 2: force the tiled (large-batch) path at a small size to verify
    # multi-tile partial-sum statistics, batch-padding masks and BN folding ---
    x2 = jax.random.normal(xkey2, (300, D_IN), jnp.float32)
    tiled_fn = jax.jit(functools.partial(ae_forward, max_tile=128, fuse_budget=0))
    enc2, dec2 = jax.block_until_ready(tiled_fn(x2, params))
    er2, dr2 = ae_forward_ref(x2, params)
    assert enc2.shape == (300, EMB), enc2.shape
    assert dec2.shape == (300, D_IN), dec2.shape
    assert jnp.allclose(enc2, er2, atol=1e-4, rtol=1e-4), \
        float(jnp.max(jnp.abs(enc2 - er2)))
    assert jnp.allclose(dec2, dr2, atol=1e-4, rtol=1e-4), \
        float(jnp.max(jnp.abs(dec2 - dr2)))

    print("KERNEL_OK")
</pallas_src>

<mosaic_0001>
module attributes {stable_mosaic.version = 11 : i64} {
  func.func @_fused_kernel(%arg0: memref<2xf32, #tpu.memory_space<smem>>, %arg1: memref<32x128xf32, #tpu.memory_space<vmem>>, %arg2: memref<32x32xf32, #tpu.memory_space<vmem>>, %arg3: memref<32x1xf32, #tpu.memory_space<vmem>>, %arg4: memref<32x1xf32, #tpu.memory_space<vmem>>, %arg5: memref<32x1xf32, #tpu.memory_space<vmem>>, %arg6: memref<16x32xf32, #tpu.memory_space<vmem>>, %arg7: memref<16x1xf32, #tpu.memory_space<vmem>>, %arg8: memref<16x1xf32, #tpu.memory_space<vmem>>, %arg9: memref<16x1xf32, #tpu.memory_space<vmem>>, %arg10: memref<32x16xf32, #tpu.memory_space<vmem>>, %arg11: memref<32x1xf32, #tpu.memory_space<vmem>>, %arg12: memref<32x1xf32, #tpu.memory_space<vmem>>, %arg13: memref<32x1xf32, #tpu.memory_space<vmem>>, %arg14: memref<32x32xf32, #tpu.memory_space<vmem>>, %arg15: memref<32x1xf32, #tpu.memory_space<vmem>>, %arg16: memref<16x128xf32, #tpu.memory_space<vmem>>, %arg17: memref<32x128xf32, #tpu.memory_space<vmem>>) attributes {dimension_semantics = [], scalar_prefetch = 0 : i64, scratch_operands = 0 : i64, tpu.core_type = #tpu.core_type<tc>} {
    %0 = tpu.iota {dimensions = array<i32: 1>} : vector<1x128xi32>
    %c16_i32 = arith.constant 16 : i32
    %1 = vector.broadcast %c16_i32 : i32 to vector<1x128xi32>
    %2 = arith.cmpi slt, %0, %1 : vector<1x128xi32>
    %c0 = arith.constant 0 : index
    %3 = memref.load %arg0[%c0] : memref<2xf32, #tpu.memory_space<smem>>
    %c1 = arith.constant 1 : index
    %4 = memref.load %arg0[%c1] : memref<2xf32, #tpu.memory_space<smem>>
    %c0_0 = arith.constant 0 : index
    %c0_1 = arith.constant 0 : index
    %5 = vector.load %arg1[%c0_0, %c0_1] : memref<32x128xf32, #tpu.memory_space<vmem>>, vector<32x128xf32>
    %c0_2 = arith.constant 0 : index
    %c0_3 = arith.constant 0 : index
    %6 = vector.load %arg2[%c0_2, %c0_3] : memref<32x32xf32, #tpu.memory_space<vmem>>, vector<32x32xf32>
    %cst = arith.constant dense<0.000000e+00> : vector<32x128xf32>
    %7 = tpu.matmul %6, %5, %cst {dimension_numbers = #tpu.dot_dimension_numbers<[1], [0], [0], [1], [0, 0, 1, 1], [], []>} : vector<32x32xf32>, vector<32x128xf32>, vector<32x128xf32> -> vector<32x128xf32>
    %c0_4 = arith.constant 0 : index
    %c0_5 = arith.constant 0 : index
    %8 = vector.load %arg3[%c0_4, %c0_5] : memref<32x1xf32, #tpu.memory_space<vmem>>, vector<32x1xf32>
    %9 = vector.broadcast %8 : vector<32x1xf32> to vector<32x128xf32>
    %10 = arith.addf %7, %9 : vector<32x128xf32>
    %cst_6 = arith.constant 0.000000e+00 : f32
    %11 = vector.broadcast %cst_6 : f32 to vector<32x128xf32>
    %12 = arith.cmpf oge, %10, %11 : vector<32x128xf32>
    %13 = vector.broadcast %3 : f32 to vector<32x128xf32>
    %14 = arith.mulf %13, %10 : vector<32x128xf32>
    %15 = arith.select %12, %10, %14 : vector<32x128xi1>, vector<32x128xf32>
    %c0_7 = arith.constant 0 : index
    %c0_8 = arith.constant 0 : index
    %16 = vector.load %arg4[%c0_7, %c0_8] : memref<32x1xf32, #tpu.memory_space<vmem>>, vector<32x1xf32>
    %c0_9 = arith.constant 0 : index
    %c0_10 = arith.constant 0 : index
    %17 = vector.load %arg5[%c0_9, %c0_10] : memref<32x1xf32, #tpu.memory_space<vmem>>, vector<32x1xf32>
    %cst_11 = arith.constant 0.000000e+00 : f32
    %18 = vector.shape_cast %2 : vector<1x128xi1> to vector<1x128xi1>
    %19 = vector.broadcast %18 : vector<1x128xi1> to vector<32x128xi1>
    %20 = vector.broadcast %cst_11 : f32 to vector<32x128xf32>
    %21 = arith.select %19, %15, %20 : vector<32x128xi1>, vector<32x128xf32>
    %cst_12 = arith.constant dense<0.000000e+00> : vector<32xf32>
    %22 = vector.multi_reduction <add>, %21, %cst_12 [1] : vector<32x128xf32> to vector<32xf32>
    %23 = vector.shape_cast %22 : vector<32xf32> to vector<32x1xf32>
    %cst_13 = arith.constant 6.250000e-02 : f32
    %24 = vector.broadcast %cst_13 : f32 to vector<32x1xf32>
    %25 = arith.mulf %23, %24 : vector<32x1xf32>
    %26 = vector.broadcast %25 : vector<32x1xf32> to vector<32x128xf32>
    %27 = arith.subf %15, %26 : vector<32x128xf32>
    %cst_14 = arith.constant 0.000000e+00 : f32
    %28 = vector.shape_cast %2 : vector<1x128xi1> to vector<1x128xi1>
    %29 = vector.broadcast %28 : vector<1x128xi1> to vector<32x128xi1>
    %30 = vector.broadcast %cst_14 : f32 to vector<32x128xf32>
    %31 = arith.select %29, %27, %30 : vector<32x128xi1>, vector<32x128xf32>
    %32 = arith.mulf %31, %31 : vector<32x128xf32>
    %cst_15 = arith.constant dense<0.000000e+00> : vector<32xf32>
    %33 = vector.multi_reduction <add>, %32, %cst_15 [1] : vector<32x128xf32> to vector<32xf32>
    %34 = vector.shape_cast %33 : vector<32xf32> to vector<32x1xf32>
    %cst_16 = arith.constant 6.250000e-02 : f32
    %35 = vector.broadcast %cst_16 : f32 to vector<32x1xf32>
    %36 = arith.mulf %34, %35 : vector<32x1xf32>
    %37 = vector.broadcast %25 : vector<32x1xf32> to vector<32x128xf32>
    %38 = arith.subf %15, %37 : vector<32x128xf32>
    %cst_17 = arith.constant 9.99999974E-6 : f32
    %39 = vector.broadcast %cst_17 : f32 to vector<32x1xf32>
    %40 = arith.addf %36, %39 : vector<32x1xf32>
    %41 = math.rsqrt %40 : vector<32x1xf32>
    %42 = vector.broadcast %41 : vector<32x1xf32> to vector<32x128xf32>
    %43 = arith.mulf %38, %42 : vector<32x128xf32>
    %44 = vector.broadcast %16 : vector<32x1xf32> to vector<32x128xf32>
    %45 = arith.mulf %43, %44 : vector<32x128xf32>
    %46 = vector.broadcast %17 : vector<32x1xf32> to vector<32x128xf32>
    %47 = arith.addf %45, %46 : vector<32x128xf32>
    %c0_18 = arith.constant 0 : index
    %c0_19 = arith.constant 0 : index
    %48 = vector.load %arg6[%c0_18, %c0_19] : memref<16x32xf32, #tpu.memory_space<vmem>>, vector<16x32xf32>
    %cst_20 = arith.constant dense<0.000000e+00> : vector<16x128xf32>
    %49 = tpu.matmul %48, %47, %cst_20 {dimension_numbers = #tpu.dot_dimension_numbers<[1], [0], [0], [1], [0, 0, 1, 1], [], []>} : vector<16x32xf32>, vector<32x128xf32>, vector<16x128xf32> -> vector<16x128xf32>
    %c0_21 = arith.constant 0 : index
    %c0_22 = arith.constant 0 : index
    %50 = vector.load %arg7[%c0_21, %c0_22] : memref<16x1xf32, #tpu.memory_space<vmem>>, vector<16x1xf32>
    %51 = vector.broadcast %50 : vector<16x1xf32> to vector<16x128xf32>
    %52 = arith.addf %49, %51 : vector<16x128xf32>
    %c0_23 = arith.constant 0 : index
    %c0_24 = arith.constant 0 : index
    %53 = vector.load %arg16[%c0_23, %c0_24] : memref<16x128xf32, #tpu.memory_space<vmem>>, vector<16x128xf32>
    tpu.vector_store %arg16[%c0_23, %c0_24], %52 {strides = array<i32>} : memref<16x128xf32, #tpu.memory_space<vmem>>, vector<16x128xf32>,
    %c0_25 = arith.constant 0 : index
    %c0_26 = arith.constant 0 : index
    %54 = vector.load %arg8[%c0_25, %c0_26] : memref<16x1xf32, #tpu.memory_space<vmem>>, vector<16x1xf32>
    %c0_27 = arith.constant 0 : index
    %c0_28 = arith.constant 0 : index
    %55 = vector.load %arg9[%c0_27, %c0_28] : memref<16x1xf32, #tpu.memory_space<vmem>>, vector<16x1xf32>
    %cst_29 = arith.constant 0.000000e+00 : f32
    %56 = vector.shape_cast %2 : vector<1x128xi1> to vector<1x128xi1>
    %57 = vector.broadcast %56 : vector<1x128xi1> to vector<16x128xi1>
    %58 = vector.broadcast %cst_29 : f32 to vector<16x128xf32>
    %59 = arith.select %57, %52, %58 : vector<16x128xi1>, vector<16x128xf32>
    %cst_30 = arith.constant dense<0.000000e+00> : vector<16xf32>
    %60 = vector.multi_reduction <add>, %59, %cst_30 [1] : vector<16x128xf32> to vector<16xf32>
    %61 = vector.shape_cast %60 : vector<16xf32> to vector<16x1xf32>
    %cst_31 = arith.constant 6.250000e-02 : f32
    %62 = vector.broadcast %cst_31 : f32 to vector<16x1xf32>
    %63 = arith.mulf %61, %62 : vector<16x1xf32>
    %64 = vector.broadcast %63 : vector<16x1xf32> to vector<16x128xf32>
    %65 = arith.subf %52, %64 : vector<16x128xf32>
    %cst_32 = arith.constant 0.000000e+00 : f32
    %66 = vector.shape_cast %2 : vector<1x128xi1> to vector<1x128xi1>
    %67 = vector.broadcast %66 : vector<1x128xi1> to vector<16x128xi1>
    %68 = vector.broadcast %cst_32 : f32 to vector<16x128xf32>
    %69 = arith.select %67, %65, %68 : vector<16x128xi1>, vector<16x128xf32>
    %70 = arith.mulf %69, %69 : vector<16x128xf32>
    %cst_33 = arith.constant dense<0.000000e+00> : vector<16xf32>
    %71 = vector.multi_reduction <add>, %70, %cst_33 [1] : vector<16x128xf32> to vector<16xf32>
    %72 = vector.shape_cast %71 : vector<16xf32> to vector<16x1xf32>
    %cst_34 = arith.constant 6.250000e-02 : f32
    %73 = vector.broadcast %cst_34 : f32 to vector<16x1xf32>
    %74 = arith.mulf %72, %73 : vector<16x1xf32>
    %75 = vector.broadcast %63 : vector<16x1xf32> to vector<16x128xf32>
    %76 = arith.subf %52, %75 : vector<16x128xf32>
    %cst_35 = arith.constant 9.99999974E-6 : f32
    %77 = vector.broadcast %cst_35 : f32 to vector<16x1xf32>
    %78 = arith.addf %74, %77 : vector<16x1xf32>
    %79 = math.rsqrt %78 : vector<16x1xf32>
    %80 = vector.broadcast %79 : vector<16x1xf32> to vector<16x128xf32>
    %81 = arith.mulf %76, %80 : vector<16x128xf32>
    %82 = vector.broadcast %54 : vector<16x1xf32> to vector<16x128xf32>
    %83 = arith.mulf %81, %82 : vector<16x128xf32>
    %84 = vector.broadcast %55 : vector<16x1xf32> to vector<16x128xf32>
    %85 = arith.addf %83, %84 : vector<16x128xf32>
    %c0_36 = arith.constant 0 : index
    %c0_37 = arith.constant 0 : index
    %86 = vector.load %arg10[%c0_36, %c0_37] : memref<32x16xf32, #tpu.memory_space<vmem>>, vector<32x16xf32>
    %cst_38 = arith.constant dense<0.000000e+00> : vector<32x128xf32>
    %87 = tpu.matmul %86, %85, %cst_38 {dimension_numbers = #tpu.dot_dimension_numbers<[1], [0], [0], [1], [0, 0, 1, 1], [], []>} : vector<32x16xf32>, vector<16x128xf32>, vector<32x128xf32> -> vector<32x128xf32>
    %c0_39 = arith.constant 0 : index
    %c0_40 = arith.constant 0 : index
    %88 = vector.load %arg11[%c0_39, %c0_40] : memref<32x1xf32, #tpu.memory_space<vmem>>, vector<32x1xf32>
    %89 = vector.broadcast %88 : vector<32x1xf32> to vector<32x128xf32>
    %90 = arith.addf %87, %89 : vector<32x128xf32>
    %cst_41 = arith.constant 0.000000e+00 : f32
    %91 = vector.broadcast %cst_41 : f32 to vector<32x128xf32>
    %92 = arith.cmpf oge, %90, %91 : vector<32x128xf32>
    %93 = vector.broadcast %4 : f32 to vector<32x128xf32>
    %94 = arith.mulf %93, %90 : vector<32x128xf32>
    %95 = arith.select %92, %90, %94 : vector<32x128xi1>, vector<32x128xf32>
    %c0_42 = arith.constant 0 : index
    %c0_43 = arith.constant 0 : index
    %96 = vector.load %arg12[%c0_42, %c0_43] : memref<32x1xf32, #tpu.memory_space<vmem>>, vector<32x1xf32>
    %c0_44 = arith.constant 0 : index
    %c0_45 = arith.constant 0 : index
    %97 = vector.load %arg13[%c0_44, %c0_45] : memref<32x1xf32, #tpu.memory_space<vmem>>, vector<32x1xf32>
    %cst_46 = arith.constant 0.000000e+00 : f32
    %98 = vector.shape_cast %2 : vector<1x128xi1> to vector<1x128xi1>
    %99 = vector.broadcast %98 : vector<1x128xi1> to vector<32x128xi1>
    %100 = vector.broadcast %cst_46 : f32 to vector<32x128xf32>
    %101 = arith.select %99, %95, %100 : vector<32x128xi1>, vector<32x128xf32>
    %cst_47 = arith.constant dense<0.000000e+00> : vector<32xf32>
    %102 = vector.multi_reduction <add>, %101, %cst_47 [1] : vector<32x128xf32> to vector<32xf32>
    %103 = vector.shape_cast %102 : vector<32xf32> to vector<32x1xf32>
    %cst_48 = arith.constant 6.250000e-02 : f32
    %104 = vector.broadcast %cst_48 : f32 to vector<32x1xf32>
    %105 = arith.mulf %103, %104 : vector<32x1xf32>
    %106 = vector.broadcast %105 : vector<32x1xf32> to vector<32x128xf32>
    %107 = arith.subf %95, %106 : vector<32x128xf32>
    %cst_49 = arith.constant 0.000000e+00 : f32
    %108 = vector.shape_cast %2 : vector<1x128xi1> to vector<1x128xi1>
    %109 = vector.broadcast %108 : vector<1x128xi1> to vector<32x128xi1>
    %110 = vector.broadcast %cst_49 : f32 to vector<32x128xf32>
    %111 = arith.select %109, %107, %110 : vector<32x128xi1>, vector<32x128xf32>
    %112 = arith.mulf %111, %111 : vector<32x128xf32>
    %cst_50 = arith.constant dense<0.000000e+00> : vector<32xf32>
    %113 = vector.multi_reduction <add>, %112, %cst_50 [1] : vector<32x128xf32> to vector<32xf32>
    %114 = vector.shape_cast %113 : vector<32xf32> to vector<32x1xf32>
    %cst_51 = arith.constant 6.250000e-02 : f32
    %115 = vector.broadcast %cst_51 : f32 to vector<32x1xf32>
    %116 = arith.mulf %114, %115 : vector<32x1xf32>
    %117 = vector.broadcast %105 : vector<32x1xf32> to vector<32x128xf32>
    %118 = arith.subf %95, %117 : vector<32x128xf32>
    %cst_52 = arith.constant 9.99999974E-6 : f32
    %119 = vector.broadcast %cst_52 : f32 to vector<32x1xf32>
    %120 = arith.addf %116, %119 : vector<32x1xf32>
    %121 = math.rsqrt %120 : vector<32x1xf32>
    %122 = vector.broadcast %121 : vector<32x1xf32> to vector<32x128xf32>
    %123 = arith.mulf %118, %122 : vector<32x128xf32>
    %124 = vector.broadcast %96 : vector<32x1xf32> to vector<32x128xf32>
    %125 = arith.mulf %123, %124 : vector<32x128xf32>
    %126 = vector.broadcast %97 : vector<32x1xf32> to vector<32x128xf32>
    %127 = arith.addf %125, %126 : vector<32x128xf32>
    %c0_53 = arith.constant 0 : index
    %c0_54 = arith.constant 0 : index
    %128 = vector.load %arg14[%c0_53, %c0_54] : memref<32x32xf32, #tpu.memory_space<vmem>>, vector<32x32xf32>
    %cst_55 = arith.constant dense<0.000000e+00> : vector<32x128xf32>
    %129 = tpu.matmul %128, %127, %cst_55 {dimension_numbers = #tpu.dot_dimension_numbers<[1], [0], [0], [1], [0, 0, 1, 1], [], []>} : vector<32x32xf32>, vector<32x128xf32>, vector<32x128xf32> -> vector<32x128xf32>
    %c0_56 = arith.constant 0 : index
    %c0_57 = arith.constant 0 : index
    %130 = vector.load %arg15[%c0_56, %c0_57] : memref<32x1xf32, #tpu.memory_space<vmem>>, vector<32x1xf32>
    %131 = vector.broadcast %130 : vector<32x1xf32> to vector<32x128xf32>
    %132 = arith.addf %129, %131 : vector<32x128xf32>
    %c0_58 = arith.constant 0 : index
    %c0_59 = arith.constant 0 : index
    %133 = vector.load %arg17[%c0_58, %c0_59] : memref<32x128xf32, #tpu.memory_space<vmem>>, vector<32x128xf32>
    tpu.vector_store %arg17[%c0_58, %c0_59], %132 {strides = array<i32>} : memref<32x128xf32, #tpu.memory_space<vmem>>, vector<32x128xf32>,
    return
  }
}

</mosaic_0001>

<llo_original>
// kernel: ae_forward.1
$region0: #{ae_forward.1}
  #allocation0 [shape = 'u32[]', space=smem, size = 0x4, offset = 0x4, fixed_abs, tag = 'smem constant byte address 0x4 - core index']
  #allocation1 [shape = 'u32[144,128]{1,0:T(1,128)}', space=vmem, size = 0x12000, scoped, tag = 'internal scratch']
  %s0 = inlined_call_operand.vmem [shape: f32[2], index: 0, kind: input, shape index: {}]
  %s1 = inlined_call_operand.vmem [shape: f32[32,128], index: 1, kind: input, shape index: {}]
  %s2 = inlined_call_operand.vmem [shape: f32[32,32], index: 2, kind: input, shape index: {}]
  %s3 = inlined_call_operand.vmem [shape: f32[32,1], index: 3, kind: input, shape index: {}]
  %s4 = inlined_call_operand.vmem [shape: f32[32,1], index: 4, kind: input, shape index: {}]
  %s5 = inlined_call_operand.vmem [shape: f32[32,1], index: 5, kind: input, shape index: {}]
  %s6 = inlined_call_operand.vmem [shape: f32[16,32], index: 6, kind: input, shape index: {}]
  %s7 = inlined_call_operand.vmem [shape: f32[16,1], index: 7, kind: input, shape index: {}]
  %s8 = inlined_call_operand.vmem [shape: f32[16,1], index: 8, kind: input, shape index: {}]
  %s9 = inlined_call_operand.vmem [shape: f32[16,1], index: 9, kind: input, shape index: {}]
  %s10 = inlined_call_operand.vmem [shape: f32[32,16], index: 10, kind: input, shape index: {}]
  %s11 = inlined_call_operand.vmem [shape: f32[32,1], index: 11, kind: input, shape index: {}]
  %s12 = inlined_call_operand.vmem [shape: f32[32,1], index: 12, kind: input, shape index: {}]
  %s13 = inlined_call_operand.vmem [shape: f32[32,1], index: 13, kind: input, shape index: {}]
  %s14 = inlined_call_operand.vmem [shape: f32[32,32], index: 14, kind: input, shape index: {}]
  %s15 = inlined_call_operand.vmem [shape: f32[32,1], index: 15, kind: input, shape index: {}]
  %s16 = inlined_call_operand.vmem [shape: f32[16,128], index: 16, kind: output, shape index: {0}]
  %s17 = inlined_call_operand.vmem [shape: f32[32,128], index: 17, kind: output, shape index: {1}]
  %18 = xla_tuple %s16, %s17
  %s19 = sld [smem:[#allocation0]]
  $region86: #{ae_forward.1} parent=0
    _
  %s21 = ssub.s32 1, %s19
  %s22 = scalar_select 0, %s21, %s19
  $region1: #{ae_forward.1} parent=0
    #allocation2 [shape = 'u8[512]{0}', space=smem, size = 0x200, scoped, tag = 'input window, operand 0, single buffered']
    #allocation3 [shape = 's32[1]{0}', space=sflag, size = 0x4, scoped, tag = 'scoped memory for ae_forward.1']
    %23 = vsyncpa [#allocation3], 0
    // Predicated region
    $region2: #{ae_forward.1} parent=1 // pred_check
      _
    $region3: #{ae_forward.1} parent=1 // pred_check_branch
      %25 = sbr.rel (0) target = $region5
    $region4: #{ae_forward.1} parent=1 // pred_region
      %s27 = ssub.s32 16, 16
      %28 = vsyncadd [#allocation3], %s27
      %s30 = sshll.u32 %s0, 4
      %s31 = int_to_ptr.vmem [resolvable:$true] %s30
      %33 = dma.vmem_to_smem %s31, 16, [#allocation2], [#allocation3]
    $region5: #{ae_forward.1} parent=1 // pred_fallthru
      _
    // Predicated region
    $region6: #{ae_forward.1} parent=1 // pred_check
      _
    $region7: #{ae_forward.1} parent=1 // pred_check_branch
      %35 = sbr.rel (0) target = $region9
    $region8: #{ae_forward.1} parent=1 // pred_region
      _
    $region9: #{ae_forward.1} parent=1 // pred_fallthru
      _
    // Predicated region
    $region10: #{ae_forward.1} parent=1 // pred_check
      _
    $region11: #{ae_forward.1} parent=1 // pred_check_branch
      %37 = sbr.rel (0) target = $region13
    $region12: #{ae_forward.1} parent=1 // pred_region
      _
    $region13: #{ae_forward.1} parent=1 // pred_fallthru
      _
    // Predicated region
    $region14: #{ae_forward.1} parent=1 // pred_check
      _
    $region15: #{ae_forward.1} parent=1 // pred_check_branch
      %39 = sbr.rel (0) target = $region17
    $region16: #{ae_forward.1} parent=1 // pred_region
      _
    $region17: #{ae_forward.1} parent=1 // pred_fallthru
      _
    // Predicated region
    $region18: #{ae_forward.1} parent=1 // pred_check
      _
    $region19: #{ae_forward.1} parent=1 // pred_check_branch
      %41 = sbr.rel (0) target = $region21
    $region20: #{ae_forward.1} parent=1 // pred_region
      _
    $region21: #{ae_forward.1} parent=1 // pred_fallthru
      _
    // Predicated region
    $region22: #{ae_forward.1} parent=1 // pred_check
      _
    $region23: #{ae_forward.1} parent=1 // pred_check_branch
      %43 = sbr.rel (0) target = $region25
    $region24: #{ae_forward.1} parent=1 // pred_region
      _
    $region25: #{ae_forward.1} parent=1 // pred_fallthru
      _
    // Predicated region
    $region26: #{ae_forward.1} parent=1 // pred_check
      _
    $region27: #{ae_forward.1} parent=1 // pred_check_branch
      %45 = sbr.rel (0) target = $region29
    $region28: #{ae_forward.1} parent=1 // pred_region
      _
    $region29: #{ae_forward.1} parent=1 // pred_fallthru
      _
    // Predicated region
    $region30: #{ae_forward.1} parent=1 // pred_check
      _
    $region31: #{ae_forward.1} parent=1 // pred_check_branch
      %47 = sbr.rel (0) target = $region33
    $region32: #{ae_forward.1} parent=1 // pred_region
      _
    $region33: #{ae_forward.1} parent=1 // pred_fallthru
      _
    // Predicated region
    $region34: #{ae_forward.1} parent=1 // pred_check
      _
    $region35: #{ae_forward.1} parent=1 // pred_check_branch
      %49 = sbr.rel (0) target = $region37
    $region36: #{ae_forward.1} parent=1 // pred_region
      _
    $region37: #{ae_forward.1} parent=1 // pred_fallthru
      _
    // Predicated region
    $region38: #{ae_forward.1} parent=1 // pred_check
      _
    $region39: #{ae_forward.1} parent=1 // pred_check_branch
      %51 = sbr.rel (0) target = $region41
    $region40: #{ae_forward.1} parent=1 // pred_region
      _
    $region41: #{ae_forward.1} parent=1 // pred_fallthru
      _
    // Predicated region
    $region42: #{ae_forward.1} parent=1 // pred_check
      _
    $region43: #{ae_forward.1} parent=1 // pred_check_branch
      %53 = sbr.rel (0) target = $region45
    $region44: #{ae_forward.1} parent=1 // pred_region
      _
    $region45: #{ae_forward.1} parent=1 // pred_fallthru
      _
    // Predicated region
    $region46: #{ae_forward.1} parent=1 // pred_check
      _
    $region47: #{ae_forward.1} parent=1 // pred_check_branch
      %55 = sbr.rel (0) target = $region49
    $region48: #{ae_forward.1} parent=1 // pred_region
      _
    $region49: #{ae_forward.1} parent=1 // pred_fallthru
      _
    // Predicated region
    $region50: #{ae_forward.1} parent=1 // pred_check
      _
    $region51: #{ae_forward.1} parent=1 // pred_check_branch
      %57 = sbr.rel (0) target = $region53
    $region52: #{ae_forward.1} parent=1 // pred_region
      _
    $region53: #{ae_forward.1} parent=1 // pred_fallthru
      _
    // Predicated region
    $region54: #{ae_forward.1} parent=1 // pred_check
      _
    $region55: #{ae_forward.1} parent=1 // pred_check_branch
      %59 = sbr.rel (0) target = $region57
    $region56: #{ae_forward.1} parent=1 // pred_region
      _
    $region57: #{ae_forward.1} parent=1 // pred_fallthru
      _
    // Predicated region
    $region58: #{ae_forward.1} parent=1 // pred_check
      _
    $region59: #{ae_forward.1} parent=1 // pred_check_branch
      %61 = sbr.rel (0) target = $region61
    $region60: #{ae_forward.1} parent=1 // pred_region
      _
    $region61: #{ae_forward.1} parent=1 // pred_fallthru
      _
    // Predicated region
    $region62: #{ae_forward.1} parent=1 // pred_check
      _
    $region63: #{ae_forward.1} parent=1 // pred_check_branch
      %63 = sbr.rel (0) target = $region65
    $region64: #{ae_forward.1} parent=1 // pred_region
      _
    $region65: #{ae_forward.1} parent=1 // pred_fallthru
      _
    // Predicated region
    $region66: #{ae_forward.1} parent=1 // pred_check
      _
    $region67: #{ae_forward.1} parent=1 // pred_check_branch
      %65 = sbr.rel (0) target = $region69
    $region68: #{ae_forward.1} parent=1 // pred_region
      %66 = dma.done [#allocation3], 16
    $region69: #{ae_forward.1} parent=1 // pred_fallthru
      _
    %67 = sfence
    %v68 = vlaneseq
    %v69 = vand.u32 %v68, 127
    %vm70 = vcmp.lt.s32.totalorder %v69, 16
    %s71 = sld [smem:[#allocation2]]
    %s72 = sld [smem:[#allocation2 + $0x1]]
    %v73 = vld [vmem:[%s1] sm:$0xff]
    %v74 = vld [vmem:[%s1 + $0x8] sm:$0xff]
    %v75 = vld [vmem:[%s1 + $0x10] sm:$0xff]
    %v76 = vld [vmem:[%s1 + $0x18] sm:$0xff]
    %v77 = vld [vmem:[%s2] sm:$0xff]
    %v78 = vld [vmem:[%s2 + $0x8] sm:$0xff]
    %v79 = vld [vmem:[%s2 + $0x10] sm:$0xff]
    %v80 = vld [vmem:[%s2 + $0x18] sm:$0xff]
    %v81 = vld [vmem:[%s3] sm:$0xff]
    %v82 = vld [vmem:[%s3 + $0x8] sm:$0xff]
    %v83 = vld [vmem:[%s3 + $0x10] sm:$0xff]
    %v84 = vld [vmem:[%s3 + $0x18] sm:$0xff]
    %86 = vset.pattern.permute.xlu0 0
    %87 = vperm.xlu0 %86, %v81
    %v88 = vpop.permute.xlu0 %87
    %91 = vset.pattern.permute.xlu0 0
    %92 = vperm.xlu0 %91, %v82
    %v93 = vpop.permute.xlu0 %92
    %96 = vset.pattern.permute.xlu0 0
    %97 = vperm.xlu0 %96, %v83
    %v98 = vpop.permute.xlu0 %97
    %101 = vset.pattern.permute.xlu0 0
    %102 = vperm.xlu0 %101, %v84
    %v103 = vpop.permute.xlu0 %102
    %vm105 = vcmask 261120
    %v107 = vsel %vm105, %v77, 0
    %v110 = vsel %vm105, %v78, 0
    %v113 = vsel %vm105, %v79, 0
    %v116 = vsel %vm105, %v80, 0
    %118 = vmatprep.subr.mxu0 0.0
    %119 = vmatpush1.msra.mxu0 %v73
    %120 = vmatprep.subr.mxu0 0.0
    %121 = vmatpush1.msra.mxu0 %v74
    %122 = vmatprep.subr.mxu0 0.0
    %123 = vmatpush1.msra.mxu0 %v75
    %124 = vmatprep.subr.mxu0 0.0
    %125 = vmatpush1.msra.mxu0 %v76
    %126 = vmatprep.subr.mxu0 0.0
    %127 = vmatpush1.msra.mxu0 0.0
    %128 = vmatprep.subr.mxu0 0.0
    %129 = vmatpush1.msra.mxu0 0.0
    %130 = vmatprep.subr.mxu0 0.0
    %131 = vmatpush1.msra.mxu0 0.0
    %132 = vmatprep.subr.mxu0 0.0
    %133 = vmatpush1.msra.mxu0 0.0
    %134 = vmatprep.subr.mxu0 0.0
    %135 = vmatpush1.msra.mxu0 0.0
    %136 = vmatprep.subr.mxu0 0.0
    %137 = vmatpush1.msra.mxu0 0.0
    %138 = vmatprep.subr.mxu0 0.0
    %139 = vmatpush1.msra.mxu0 0.0
    %140 = vmatprep.subr.mxu0 0.0
    %141 = vmatpush1.msra.mxu0 0.0
    %142 = vmatprep.subr.mxu0 0.0
    %143 = vmatpush1.msra.mxu0 0.0
    %144 = vmatprep.subr.mxu0 0.0
    %145 = vmatpush1.msra.mxu0 0.0
    %146 = vmatprep.subr.mxu0 0.0
    %147 = vmatpush1.msra.mxu0 0.0
    %148 = vmatprep.subr.mxu0 0.0
    %149 = vmatpush1.msra.mxu0 0.0
    %150 = vmatprep.subr.mxu0 0.0
    %151 = vmatpush1.msra.mxu0 0.0
    %152 = vmatprep.subr.mxu0 0.0
    %153 = vmatpush1.msra.mxu0 0.0
    %154 = vmatprep.subr.mxu0 0.0
    %155 = vmatpush1.msra.mxu0 0.0
    %156 = vmatprep.subr.mxu0 0.0
    %157 = vmatpush1.msra.mxu0 0.0
    %158 = vmatprep.subr.mxu0 0.0
    %159 = vmatpush1.msra.mxu0 0.0
    %160 = vmatprep.subr.mxu0 0.0
    %161 = vmatpush1.msra.mxu0 0.0
    %162 = vmatprep.subr.mxu0 0.0
    %163 = vmatpush1.msra.mxu0 0.0
    %164 = vmatprep.subr.mxu0 0.0
    %165 = vmatpush1.msra.mxu0 0.0
    %166 = vmatprep.subr.mxu0 0.0
    %167 = vmatpush1.msra.mxu0 0.0
    %168 = vmatprep.subr.mxu0 0.0
    %169 = vmatpush1.msra.mxu0 0.0
    %170 = vmatprep.subr.mxu0 0.0
    %171 = vmatpush1.msra.mxu0 0.0
    %172 = vmatprep.subr.mxu0 0.0
    %173 = vmatpush1.msra.mxu0 0.0
    %174 = vmatprep.subr.mxu0 0.0
    %175 = vmatpush1.msra.mxu0 0.0
    %176 = vmatprep.subr.mxu0 0.0
    %177 = vmatpush1.msra.mxu0 0.0
    %178 = vmatprep.subr.mxu0 0.0
    %179 = vmatpush1.msra.mxu0 0.0
    %180 = vmatprep.subr.mxu0 0.0
    %181 = vmatpush1.msra.mxu0 0.0
    %182 = vmatprep.mubr.f32.mxu0 0.0
    %183 = vmatmul.mubr.f32.gmra.mrb[0].mxu0 %v107
    %v184 = vpop.f32.mrb[0].mxu0
    %v185 = vadd.f32 %v88, %v184
    %v186 = vpop.f32.mrb[0].mxu0
    %187 = vmatprep.mubr.f32.mxu0 0.0
    %188 = vmatmul.mubr.f32.gmra.mrb[0].mxu0 %v110
    %v189 = vpop.f32.mrb[0].mxu0
    %v190 = vadd.f32 %v93, %v189
    %v191 = vpop.f32.mrb[0].mxu0
    %192 = vmatprep.mubr.f32.mxu0 0.0
    %193 = vmatmul.mubr.f32.gmra.mrb[0].mxu0 %v113
    %v194 = vpop.f32.mrb[0].mxu0
    %v195 = vadd.f32 %v98, %v194
    %v196 = vpop.f32.mrb[0].mxu0
    %197 = vmatprep.mubr.f32.mxu0 0.0
    %198 = vmatmul.mubr.f32.gmra.mrb[0].mxu0 %v116
    %v199 = vpop.f32.mrb[0].mxu0
    %v200 = vadd.f32 %v103, %v199
    %v201 = vpop.f32.mrb[0].mxu0
    %202 = vdwg.mxu0
    %vm203 = vcmp.ge.f32.partialorder %v185, 0.0
    %vm204 = vcmp.ge.f32.partialorder %v190, 0.0
    %vm205 = vcmp.ge.f32.partialorder %v195, 0.0
    %vm206 = vcmp.ge.f32.partialorder %v200, 0.0
    %v207 = vstv %s71
    %v208 = vmul.f32 %v207, %v185
    %v209 = vmul.f32 %v207, %v190
    %v210 = vmul.f32 %v207, %v195
    %v211 = vmul.f32 %v207, %v200
    %v212 = vsel %vm203, %v185, %v208
    %v213 = vsel %vm204, %v190, %v209
    %v214 = vsel %vm205, %v195, %v210
    %v215 = vsel %vm206, %v200, %v211
    %v216 = vld [vmem:[%s4] sm:$0xff]
    %v217 = vld [vmem:[%s4 + $0x8] sm:$0xff]
    %v218 = vld [vmem:[%s4 + $0x10] sm:$0xff]
    %v219 = vld [vmem:[%s4 + $0x18] sm:$0xff]
    %v220 = vld [vmem:[%s5] sm:$0xff]
    %v221 = vld [vmem:[%s5 + $0x8] sm:$0xff]
    %v222 = vld [vmem:[%s5 + $0x10] sm:$0xff]
    %v223 = vld [vmem:[%s5 + $0x18] sm:$0xff]
    %v224 = vsel %vm70, 1, 0
    %vm225 = vcmp.eq.s32.totalorder %v224, 1
    %v226 = vsel %vm225, %v212, 0.0
    %v227 = vsel %vm225, %v213, 0.0
    %v228 = vsel %vm225, %v214, 0.0
    %v229 = vsel %vm225, %v215, 0.0
    %230 = vadd.xlane.f32.xlu0 %v226
    %v231 = vpop.xlane.xlu0 %230
    %232 = vadd.xlane.f32.xlu0 %v227
    %v233 = vpop.xlane.xlu0 %232
    %234 = vadd.xlane.f32.xlu0 %v228
    %v235 = vpop.xlane.xlu0 %234
    %236 = vadd.xlane.f32.xlu0 %v229
    %v237 = vpop.xlane.xlu0 %236
    %v238 = vmul.f32 %v231, 0.0625
    %v239 = vmul.f32 %v233, 0.0625
    %v240 = vmul.f32 %v235, 0.0625
    %v241 = vmul.f32 %v237, 0.0625
    %v242 = vsub.f32 %v212, %v238
    %v243 = vsub.f32 %v213, %v239
    %v244 = vsub.f32 %v214, %v240
    %v245 = vsub.f32 %v215, %v241
    %v246 = vsel %vm225, %v242, 0.0
    %v247 = vsel %vm225, %v243, 0.0
    %v248 = vsel %vm225, %v244, 0.0
    %v249 = vsel %vm225, %v245, 0.0
    %v250 = vmul.f32 %v246, %v246
    %v251 = vmul.f32 %v247, %v247
    %v252 = vmul.f32 %v248, %v248
    %v253 = vmul.f32 %v249, %v249
    %254 = vadd.xlane.f32.xlu0 %v250
    %v255 = vpop.xlane.xlu0 %254
    %256 = vadd.xlane.f32.xlu0 %v251
    %v257 = vpop.xlane.xlu0 %256
    %258 = vadd.xlane.f32.xlu0 %v252
    %v259 = vpop.xlane.xlu0 %258
    %260 = vadd.xlane.f32.xlu0 %v253
    %v261 = vpop.xlane.xlu0 %260
    %v262 = vmul.f32 %v255, 0.0625
    %v263 = vmul.f32 %v257, 0.0625
    %v264 = vmul.f32 %v259, 0.0625
    %v265 = vmul.f32 %v261, 0.0625
    %v266 = vadd.f32 %v262, 1e-05
    %v267 = vadd.f32 %v263, 1e-05
    %v268 = vadd.f32 %v264, 1e-05
    %v269 = vadd.f32 %v265, 1e-05
    %v270 = vrsqrt.pop %v266
    %v271 = vrsqrt.pop %v267
    %v272 = vrsqrt.pop %v268
    %v273 = vrsqrt.pop %v269
    %v274 = vmul.f32 %v242, %v270
    %v275 = vmul.f32 %v243, %v271
    %v276 = vmul.f32 %v244, %v272
    %v277 = vmul.f32 %v245, %v273
    %279 = vset.pattern.permute.xlu0 0
    %280 = vperm.xlu0 %279, %v216
    %v281 = vpop.permute.xlu0 %280
    %284 = vset.pattern.permute.xlu0 0
    %285 = vperm.xlu0 %284, %v217
    %v286 = vpop.permute.xlu0 %285
    %289 = vset.pattern.permute.xlu0 0
    %290 = vperm.xlu0 %289, %v218
    %v291 = vpop.permute.xlu0 %290
    %294 = vset.pattern.permute.xlu0 0
    %295 = vperm.xlu0 %294, %v219
    %v296 = vpop.permute.xlu0 %295
    %v298 = vmul.f32 %v274, %v281
    %v299 = vmul.f32 %v275, %v286
    %v300 = vmul.f32 %v276, %v291
    %v301 = vmul.f32 %v277, %v296
    %303 = vset.pattern.permute.xlu0 0
    %304 = vperm.xlu0 %303, %v220
    %v305 = vpop.permute.xlu0 %304
    %308 = vset.pattern.permute.xlu0 0
    %309 = vperm.xlu0 %308, %v221
    %v310 = vpop.permute.xlu0 %309
    %313 = vset.pattern.permute.xlu0 0
    %314 = vperm.xlu0 %313, %v222
    %v315 = vpop.permute.xlu0 %314
    %318 = vset.pattern.permute.xlu0 0
    %319 = vperm.xlu0 %318, %v223
    %v320 = vpop.permute.xlu0 %319
    %v322 = vadd.f32 %v298, %v305
    %v323 = vadd.f32 %v299, %v310
    %v324 = vadd.f32 %v300, %v315
    %v325 = vadd.f32 %v301, %v320
    %v326 = vld [vmem:[%s6] sm:$0xff]
    %v327 = vld [vmem:[%s6 + $0x8] sm:$0xff]
    %v328 = vld [vmem:[%s7] sm:$0xff]
    %v329 = vld [vmem:[%s7 + $0x8] sm:$0xff]
    %331 = vset.pattern.permute.xlu0 0
    %332 = vperm.xlu0 %331, %v328
    %v333 = vpop.permute.xlu0 %332
    %336 = vset.pattern.permute.xlu0 0
    %337 = vperm.xlu0 %336, %v329
    %v338 = vpop.permute.xlu0 %337
    %v341 = vsel %vm105, %v326, 0
    %v344 = vsel %vm105, %v327, 0
    %346 = vmatprep.subr.mxu0 0.0
    %347 = vmatpush1.msra.mxu0 %v322
    %348 = vmatprep.subr.mxu0 0.0
    %349 = vmatpush1.msra.mxu0 %v323
    %350 = vmatprep.subr.mxu0 0.0
    %351 = vmatpush1.msra.mxu0 %v324
    %352 = vmatprep.subr.mxu0 0.0
    %353 = vmatpush1.msra.mxu0 %v325
    %354 = vmatprep.subr.mxu0 0.0
    %355 = vmatpush1.msra.mxu0 0.0
    %356 = vmatprep.subr.mxu0 0.0
    %357 = vmatpush1.msra.mxu0 0.0
    %358 = vmatprep.subr.mxu0 0.0
    %359 = vmatpush1.msra.mxu0 0.0
    %360 = vmatprep.subr.mxu0 0.0
    %361 = vmatpush1.msra.mxu0 0.0
    %362 = vmatprep.subr.mxu0 0.0
    %363 = vmatpush1.msra.mxu0 0.0
    %364 = vmatprep.subr.mxu0 0.0
    %365 = vmatpush1.msra.mxu0 0.0
    %366 = vmatprep.subr.mxu0 0.0
    %367 = vmatpush1.msra.mxu0 0.0
    %368 = vmatprep.subr.mxu0 0.0
    %369 = vmatpush1.msra.mxu0 0.0
    %370 = vmatprep.subr.mxu0 0.0
    %371 = vmatpush1.msra.mxu0 0.0
    %372 = vmatprep.subr.mxu0 0.0
    %373 = vmatpush1.msra.mxu0 0.0
    %374 = vmatprep.subr.mxu0 0.0
    %375 = vmatpush1.msra.mxu0 0.0
    %376 = vmatprep.subr.mxu0 0.0
    %377 = vmatpush1.msra.mxu0 0.0
    %378 = vmatprep.subr.mxu0 0.0
    %379 = vmatpush1.msra.mxu0 0.0
    %380 = vmatprep.subr.mxu0 0.0
    %381 = vmatpush1.msra.mxu0 0.0
    %382 = vmatprep.subr.mxu0 0.0
    %383 = vmatpush1.msra.mxu0 0.0
    %384 = vmatprep.subr.mxu0 0.0
    %385 = vmatpush1.msra.mxu0 0.0
    %386 = vmatprep.subr.mxu0 0.0
    %387 = vmatpush1.msra.mxu0 0.0
    %388 = vmatprep.subr.mxu0 0.0
    %389 = vmatpush1.msra.mxu0 0.0
    %390 = vmatprep.subr.mxu0 0.0
    %391 = vmatpush1.msra.mxu0 0.0
    %392 = vmatprep.subr.mxu0 0.0
    %393 = vmatpush1.msra.mxu0 0.0
    %394 = vmatprep.subr.mxu0 0.0
    %395 = vmatpush1.msra.mxu0 0.0
    %396 = vmatprep.subr.mxu0 0.0
    %397 = vmatpush1.msra.mxu0 0.0
    %398 = vmatprep.subr.mxu0 0.0
    %399 = vmatpush1.msra.mxu0 0.0
    %400 = vmatprep.subr.mxu0 0.0
    %401 = vmatpush1.msra.mxu0 0.0
    %402 = vmatprep.subr.mxu0 0.0
    %403 = vmatpush1.msra.mxu0 0.0
    %404 = vmatprep.subr.mxu0 0.0
    %405 = vmatpush1.msra.mxu0 0.0
    %406 = vmatprep.subr.mxu0 0.0
    %407 = vmatpush1.msra.mxu0 0.0
    %408 = vmatprep.subr.mxu0 0.0
    %409 = vmatpush1.msra.mxu0 0.0
    %410 = vmatprep.mubr.f32.mxu0 0.0
    %411 = vmatmul.mubr.f32.gmra.mrb[0].mxu0 %v341
    %v412 = vpop.f32.mrb[0].mxu0
    %v413 = vadd.f32 %v333, %v412
    %v414 = vpop.f32.mrb[0].mxu0
    %415 = vmatprep.mubr.f32.mxu0 0.0
    %416 = vmatmul.mubr.f32.gmra.mrb[0].mxu0 %v344
    %v417 = vpop.f32.mrb[0].mxu0
    %v418 = vadd.f32 %v338, %v417
    %v419 = vpop.f32.mrb[0].mxu0
    %420 = vdwg.mxu0
    %421 = vst [vmem:[%s16] sm:$0xff] %v413
    %422 = vst [vmem:[%s16 + $0x8] sm:$0xff] %v418
    %v423 = vld [vmem:[%s8] sm:$0xff]
    %v424 = vld [vmem:[%s8 + $0x8] sm:$0xff]
    %v425 = vld [vmem:[%s9] sm:$0xff]
    %v426 = vld [vmem:[%s9 + $0x8] sm:$0xff]
    %v427 = vsel %vm225, %v413, 0.0
    %v428 = vsel %vm225, %v418, 0.0
    %429 = vadd.xlane.f32.xlu0 %v427
    %v430 = vpop.xlane.xlu0 %429
    %431 = vadd.xlane.f32.xlu0 %v428
    %v432 = vpop.xlane.xlu0 %431
    %v433 = vmul.f32 %v430, 0.0625
    %v434 = vmul.f32 %v432, 0.0625
    %v435 = vsub.f32 %v413, %v433
    %v436 = vsub.f32 %v418, %v434
    %v437 = vsel %vm225, %v435, 0.0
    %v438 = vsel %vm225, %v436, 0.0
    %v439 = vmul.f32 %v437, %v437
    %v440 = vmul.f32 %v438, %v438
    %441 = vadd.xlane.f32.xlu0 %v439
    %v442 = vpop.xlane.xlu0 %441
    %443 = vadd.xlane.f32.xlu0 %v440
    %v444 = vpop.xlane.xlu0 %443
    %v445 = vmul.f32 %v442, 0.0625
    %v446 = vmul.f32 %v444, 0.0625
    %v447 = vadd.f32 %v445, 1e-05
    %v448 = vadd.f32 %v446, 1e-05
    %v449 = vrsqrt.pop %v447
    %v450 = vrsqrt.pop %v448
    %v451 = vmul.f32 %v435, %v449
    %v452 = vmul.f32 %v436, %v450
    %454 = vset.pattern.permute.xlu0 0
    %455 = vperm.xlu0 %454, %v423
    %v456 = vpop.permute.xlu0 %455
    %459 = vset.pattern.permute.xlu0 0
    %460 = vperm.xlu0 %459, %v424
    %v461 = vpop.permute.xlu0 %460
    %v463 = vmul.f32 %v451, %v456
    %v464 = vmul.f32 %v452, %v461
    %466 = vset.pattern.permute.xlu0 0
    %467 = vperm.xlu0 %466, %v425
    %v468 = vpop.permute.xlu0 %467
    %471 = vset.pattern.permute.xlu0 0
    %472 = vperm.xlu0 %471, %v426
    %v473 = vpop.permute.xlu0 %472
    %v475 = vadd.f32 %v463, %v468
    %v476 = vadd.f32 %v464, %v473
    %v477 = vld [vmem:[%s10] sm:$0xff]
    %v478 = vld [vmem:[%s10 + $0x8] sm:$0xff]
    %v479 = vld [vmem:[%s10 + $0x10] sm:$0xff]
    %v480 = vld [vmem:[%s10 + $0x18] sm:$0xff]
    %v481 = vld [vmem:[%s11] sm:$0xff]
    %v482 = vld [vmem:[%s11 + $0x8] sm:$0xff]
    %v483 = vld [vmem:[%s11 + $0x10] sm:$0xff]
    %v484 = vld [vmem:[%s11 + $0x18] sm:$0xff]
    %486 = vset.pattern.permute.xlu0 0
    %487 = vperm.xlu0 %486, %v481
    %v488 = vpop.permute.xlu0 %487
    %491 = vset.pattern.permute.xlu0 0
    %492 = vperm.xlu0 %491, %v482
    %v493 = vpop.permute.xlu0 %492
    %496 = vset.pattern.permute.xlu0 0
    %497 = vperm.xlu0 %496, %v483
    %v498 = vpop.permute.xlu0 %497
    %501 = vset.pattern.permute.xlu0 0
    %502 = vperm.xlu0 %501, %v484
    %v503 = vpop.permute.xlu0 %502
    %vm505 = vcmask 130048
    %v507 = vsel %vm505, %v477, 0
    %v510 = vsel %vm505, %v478, 0
    %v513 = vsel %vm505, %v479, 0
    %v516 = vsel %vm505, %v480, 0
    %518 = vmatprep.subr.mxu0 0.0
    %519 = vmatpush1.msra.mxu0 %v475
    %520 = vmatprep.subr.mxu0 0.0
    %521 = vmatpush1.msra.mxu0 %v476
    %522 = vmatprep.subr.mxu0 0.0
    %523 = vmatpush1.msra.mxu0 0.0
    %524 = vmatprep.subr.mxu0 0.0
    %525 = vmatpush1.msra.mxu0 0.0
    %526 = vmatprep.subr.mxu0 0.0
    %527 = vmatpush1.msra.mxu0 0.0
    %528 = vmatprep.subr.mxu0 0.0
    %529 = vmatpush1.msra.mxu0 0.0
    %530 = vmatprep.subr.mxu0 0.0
    %531 = vmatpush1.msra.mxu0 0.0
    %532 = vmatprep.subr.mxu0 0.0
    %533 = vmatpush1.msra.mxu0 0.0
    %534 = vmatprep.subr.mxu0 0.0
    %535 = vmatpush1.msra.mxu0 0.0
    %536 = vmatprep.subr.mxu0 0.0
    %537 = vmatpush1.msra.mxu0 0.0
    %538 = vmatprep.subr.mxu0 0.0
    %539 = vmatpush1.msra.mxu0 0.0
    %540 = vmatprep.subr.mxu0 0.0
    %541 = vmatpush1.msra.mxu0 0.0
    %542 = vmatprep.subr.mxu0 0.0
    %543 = vmatpush1.msra.mxu0 0.0
    %544 = vmatprep.subr.mxu0 0.0
    %545 = vmatpush1.msra.mxu0 0.0
    %546 = vmatprep.subr.mxu0 0.0
    %547 = vmatpush1.msra.mxu0 0.0
    %548 = vmatprep.subr.mxu0 0.0
    %549 = vmatpush1.msra.mxu0 0.0
    %550 = vmatprep.subr.mxu0 0.0
    %551 = vmatpush1.msra.mxu0 0.0
    %552 = vmatprep.subr.mxu0 0.0
    %553 = vmatpush1.msra.mxu0 0.0
    %554 = vmatprep.subr.mxu0 0.0
    %555 = vmatpush1.msra.mxu0 0.0
    %556 = vmatprep.subr.mxu0 0.0
    %557 = vmatpush1.msra.mxu0 0.0
    %558 = vmatprep.subr.mxu0 0.0
    %559 = vmatpush1.msra.mxu0 0.0
    %560 = vmatprep.subr.mxu0 0.0
    %561 = vmatpush1.msra.mxu0 0.0
    %562 = vmatprep.subr.mxu0 0.0
    %563 = vmatpush1.msra.mxu0 0.0
    %564 = vmatprep.subr.mxu0 0.0
    %565 = vmatpush1.msra.mxu0 0.0
    %566 = vmatprep.subr.mxu0 0.0
    %567 = vmatpush1.msra.mxu0 0.0
    %568 = vmatprep.subr.mxu0 0.0
    %569 = vmatpush1.msra.mxu0 0.0
    %570 = vmatprep.subr.mxu0 0.0
    %571 = vmatpush1.msra.mxu0 0.0
    %572 = vmatprep.subr.mxu0 0.0
    %573 = vmatpush1.msra.mxu0 0.0
    %574 = vmatprep.subr.mxu0 0.0
    %575 = vmatpush1.msra.mxu0 0.0
    %576 = vmatprep.subr.mxu0 0.0
    %577 = vmatpush1.msra.mxu0 0.0
    %578 = vmatprep.subr.mxu0 0.0
    %579 = vmatpush1.msra.mxu0 0.0
    %580 = vmatprep.subr.mxu0 0.0
    %581 = vmatpush1.msra.mxu0 0.0
    %582 = vmatprep.mubr.f32.mxu0 0.0
    %583 = vmatmul.mubr.f32.gmra.mrb[0].mxu0 %v507
    %v584 = vpop.f32.mrb[0].mxu0
    %v585 = vadd.f32 %v488, %v584
    %v586 = vpop.f32.mrb[0].mxu0
    %587 = vmatprep.mubr.f32.mxu0 0.0
    %588 = vmatmul.mubr.f32.gmra.mrb[0].mxu0 %v510
    %v589 = vpop.f32.mrb[0].mxu0
    %v590 = vadd.f32 %v493, %v589
    %v591 = vpop.f32.mrb[0].mxu0
    %592 = vmatprep.mubr.f32.mxu0 0.0
    %593 = vmatmul.mubr.f32.gmra.mrb[0].mxu0 %v513
    %v594 = vpop.f32.mrb[0].mxu0
    %v595 = vadd.f32 %v498, %v594
    %v596 = vpop.f32.mrb[0].mxu0
    %597 = vmatprep.mubr.f32.mxu0 0.0
    %598 = vmatmul.mubr.f32.gmra.mrb[0].mxu0 %v516
    %v599 = vpop.f32.mrb[0].mxu0
    %v600 = vadd.f32 %v503, %v599
    %v601 = vpop.f32.mrb[0].mxu0
    %602 = vdwg.mxu0
    %vm603 = vcmp.ge.f32.partialorder %v585, 0.0
    %vm604 = vcmp.ge.f32.partialorder %v590, 0.0
    %vm605 = vcmp.ge.f32.partialorder %v595, 0.0
    %vm606 = vcmp.ge.f32.partialorder %v600, 0.0
    %v607 = vstv %s72
    %v608 = vmul.f32 %v607, %v585
    %v609 = vmul.f32 %v607, %v590
    %v610 = vmul.f32 %v607, %v595
    %v611 = vmul.f32 %v607, %v600
    %v612 = vsel %vm603, %v585, %v608
    %v613 = vsel %vm604, %v590, %v609
    %v614 = vsel %vm605, %v595, %v610
    %v615 = vsel %vm606, %v600, %v611
    %v616 = vld [vmem:[%s12] sm:$0xff]
    %v617 = vld [vmem:[%s12 + $0x8] sm:$0xff]
    %v618 = vld [vmem:[%s12 + $0x10] sm:$0xff]
    %v619 = vld [vmem:[%s12 + $0x18] sm:$0xff]
    %v620 = vld [vmem:[%s13] sm:$0xff]
    %v621 = vld [vmem:[%s13 + $0x8] sm:$0xff]
    %v622 = vld [vmem:[%s13 + $0x10] sm:$0xff]
    %v623 = vld [vmem:[%s13 + $0x18] sm:$0xff]
    %v624 = vsel %vm225, %v612, 0.0
    %v625 = vsel %vm225, %v613, 0.0
    %v626 = vsel %vm225, %v614, 0.0
    %v627 = vsel %vm225, %v615, 0.0
    %628 = vadd.xlane.f32.xlu0 %v624
    %v629 = vpop.xlane.xlu0 %628
    %630 = vadd.xlane.f32.xlu0 %v625
    %v631 = vpop.xlane.xlu0 %630
    %632 = vadd.xlane.f32.xlu0 %v626
    %v633 = vpop.xlane.xlu0 %632
    %634 = vadd.xlane.f32.xlu0 %v627
    %v635 = vpop.xlane.xlu0 %634
    %v636 = vmul.f32 %v629, 0.0625
    %v637 = vmul.f32 %v631, 0.0625
    %v638 = vmul.f32 %v633, 0.0625
    %v639 = vmul.f32 %v635, 0.0625
    %v640 = vsub.f32 %v612, %v636
    %v641 = vsub.f32 %v613, %v637
    %v642 = vsub.f32 %v614, %v638
    %v643 = vsub.f32 %v615, %v639
    %v644 = vsel %vm225, %v640, 0.0
    %v645 = vsel %vm225, %v641, 0.0
    %v646 = vsel %vm225, %v642, 0.0
    %v647 = vsel %vm225, %v643, 0.0
    %v648 = vmul.f32 %v644, %v644
    %v649 = vmul.f32 %v645, %v645
    %v650 = vmul.f32 %v646, %v646
    %v651 = vmul.f32 %v647, %v647
    %652 = vadd.xlane.f32.xlu0 %v648
    %v653 = vpop.xlane.xlu0 %652
    %654 = vadd.xlane.f32.xlu0 %v649
    %v655 = vpop.xlane.xlu0 %654
    %656 = vadd.xlane.f32.xlu0 %v650
    %v657 = vpop.xlane.xlu0 %656
    %658 = vadd.xlane.f32.xlu0 %v651
    %v659 = vpop.xlane.xlu0 %658
    %v660 = vmul.f32 %v653, 0.0625
    %v661 = vmul.f32 %v655, 0.0625
    %v662 = vmul.f32 %v657, 0.0625
    %v663 = vmul.f32 %v659, 0.0625
    %v664 = vadd.f32 %v660, 1e-05
    %v665 = vadd.f32 %v661, 1e-05
    %v666 = vadd.f32 %v662, 1e-05
    %v667 = vadd.f32 %v663, 1e-05
    %v668 = vrsqrt.pop %v664
    %v669 = vrsqrt.pop %v665
    %v670 = vrsqrt.pop %v666
    %v671 = vrsqrt.pop %v667
    %v672 = vmul.f32 %v640, %v668
    %v673 = vmul.f32 %v641, %v669
    %v674 = vmul.f32 %v642, %v670
    %v675 = vmul.f32 %v643, %v671
    %677 = vset.pattern.permute.xlu0 0
    %678 = vperm.xlu0 %677, %v616
    %v679 = vpop.permute.xlu0 %678
    %682 = vset.pattern.permute.xlu0 0
    %683 = vperm.xlu0 %682, %v617
    %v684 = vpop.permute.xlu0 %683
    %687 = vset.pattern.permute.xlu0 0
    %688 = vperm.xlu0 %687, %v618
    %v689 = vpop.permute.xlu0 %688
    %692 = vset.pattern.permute.xlu0 0
    %693 = vperm.xlu0 %692, %v619
    %v694 = vpop.permute.xlu0 %693
    %v696 = vmul.f32 %v672, %v679
    %v697 = vmul.f32 %v673, %v684
    %v698 = vmul.f32 %v674, %v689
    %v699 = vmul.f32 %v675, %v694
    %701 = vset.pattern.permute.xlu0 0
    %702 = vperm.xlu0 %701, %v620
    %v703 = vpop.permute.xlu0 %702
    %706 = vset.pattern.permute.xlu0 0
    %707 = vperm.xlu0 %706, %v621
    %v708 = vpop.permute.xlu0 %707
    %711 = vset.pattern.permute.xlu0 0
    %712 = vperm.xlu0 %711, %v622
    %v713 = vpop.permute.xlu0 %712
    %716 = vset.pattern.permute.xlu0 0
    %717 = vperm.xlu0 %716, %v623
    %v718 = vpop.permute.xlu0 %717
    %v720 = vadd.f32 %v696, %v703
    %v721 = vadd.f32 %v697, %v708
    %v722 = vadd.f32 %v698, %v713
    %v723 = vadd.f32 %v699, %v718
    %v724 = vld [vmem:[%s14] sm:$0xff]
    %v725 = vld [vmem:[%s14 + $0x8] sm:$0xff]
    %v726 = vld [vmem:[%s14 + $0x10] sm:$0xff]
    %v727 = vld [vmem:[%s14 + $0x18] sm:$0xff]
    %v728 = vld [vmem:[%s15] sm:$0xff]
    %v729 = vld [vmem:[%s15 + $0x8] sm:$0xff]
    %v730 = vld [vmem:[%s15 + $0x10] sm:$0xff]
    %v731 = vld [vmem:[%s15 + $0x18] sm:$0xff]
    %733 = vset.pattern.permute.xlu0 0
    %734 = vperm.xlu0 %733, %v728
    %v735 = vpop.permute.xlu0 %734
    %738 = vset.pattern.permute.xlu0 0
    %739 = vperm.xlu0 %738, %v729
    %v740 = vpop.permute.xlu0 %739
    %743 = vset.pattern.permute.xlu0 0
    %744 = vperm.xlu0 %743, %v730
    %v745 = vpop.permute.xlu0 %744
    %748 = vset.pattern.permute.xlu0 0
    %749 = vperm.xlu0 %748, %v731
    %v750 = vpop.permute.xlu0 %749
    %v753 = vsel %vm105, %v724, 0
    %v756 = vsel %vm105, %v725, 0
    %v759 = vsel %vm105, %v726, 0
    %v762 = vsel %vm105, %v727, 0
    %764 = vmatprep.subr.mxu0 0.0
    %765 = vmatpush1.msra.mxu0 %v720
    %766 = vmatprep.subr.mxu0 0.0
    %767 = vmatpush1.msra.mxu0 %v721
    %768 = vmatprep.subr.mxu0 0.0
    %769 = vmatpush1.msra.mxu0 %v722
    %770 = vmatprep.subr.mxu0 0.0
    %771 = vmatpush1.msra.mxu0 %v723
    %772 = vmatprep.subr.mxu0 0.0
    %773 = vmatpush1.msra.mxu0 0.0
    %774 = vmatprep.subr.mxu0 0.0
    %775 = vmatpush1.msra.mxu0 0.0
    %776 = vmatprep.subr.mxu0 0.0
    %777 = vmatpush1.msra.mxu0 0.0
    %778 = vmatprep.subr.mxu0 0.0
    %779 = vmatpush1.msra.mxu0 0.0
    %780 = vmatprep.subr.mxu0 0.0
    %781 = vmatpush1.msra.mxu0 0.0
    %782 = vmatprep.subr.mxu0 0.0
    %783 = vmatpush1.msra.mxu0 0.0
    %784 = vmatprep.subr.mxu0 0.0
    %785 = vmatpush1.msra.mxu0 0.0
    %786 = vmatprep.subr.mxu0 0.0
    %787 = vmatpush1.msra.mxu0 0.0
    %788 = vmatprep.subr.mxu0 0.0
    %789 = vmatpush1.msra.mxu0 0.0
    %790 = vmatprep.subr.mxu0 0.0
    %791 = vmatpush1.msra.mxu0 0.0
    %792 = vmatprep.subr.mxu0 0.0
    %793 = vmatpush1.msra.mxu0 0.0
    %794 = vmatprep.subr.mxu0 0.0
    %795 = vmatpush1.msra.mxu0 0.0
    %796 = vmatprep.subr.mxu0 0.0
    %797 = vmatpush1.msra.mxu0 0.0
    %798 = vmatprep.subr.mxu0 0.0
    %799 = vmatpush1.msra.mxu0 0.0
    %800 = vmatprep.subr.mxu0 0.0
    %801 = vmatpush1.msra.mxu0 0.0
    %802 = vmatprep.subr.mxu0 0.0
    %803 = vmatpush1.msra.mxu0 0.0
    %804 = vmatprep.subr.mxu0 0.0
    %805 = vmatpush1.msra.mxu0 0.0
    %806 = vmatprep.subr.mxu0 0.0
    %807 = vmatpush1.msra.mxu0 0.0
    %808 = vmatprep.subr.mxu0 0.0
    %809 = vmatpush1.msra.mxu0 0.0
    %810 = vmatprep.subr.mxu0 0.0
    %811 = vmatpush1.msra.mxu0 0.0
    %812 = vmatprep.subr.mxu0 0.0
    %813 = vmatpush1.msra.mxu0 0.0
    %814 = vmatprep.subr.mxu0 0.0
    %815 = vmatpush1.msra.mxu0 0.0
    %816 = vmatprep.subr.mxu0 0.0
    %817 = vmatpush1.msra.mxu0 0.0
    %818 = vmatprep.subr.mxu0 0.0
    %819 = vmatpush1.msra.mxu0 0.0
    %820 = vmatprep.subr.mxu0 0.0
    %821 = vmatpush1.msra.mxu0 0.0
    %822 = vmatprep.subr.mxu0 0.0
    %823 = vmatpush1.msra.mxu0 0.0
    %824 = vmatprep.subr.mxu0 0.0
    %825 = vmatpush1.msra.mxu0 0.0
    %826 = vmatprep.subr.mxu0 0.0
    %827 = vmatpush1.msra.mxu0 0.0
    %828 = vmatprep.mubr.f32.mxu0 0.0
    %829 = vmatmul.mubr.f32.gmra.mrb[0].mxu0 %v753
    %v830 = vpop.f32.mrb[0].mxu0
    %v831 = vadd.f32 %v735, %v830
    %v832 = vpop.f32.mrb[0].mxu0
    %833 = vmatprep.mubr.f32.mxu0 0.0
    %834 = vmatmul.mubr.f32.gmra.mrb[0].mxu0 %v756
    %v835 = vpop.f32.mrb[0].mxu0
    %v836 = vadd.f32 %v740, %v835
    %v837 = vpop.f32.mrb[0].mxu0
    %838 = vmatprep.mubr.f32.mxu0 0.0
    %839 = vmatmul.mubr.f32.gmra.mrb[0].mxu0 %v759
    %v840 = vpop.f32.mrb[0].mxu0
    %v841 = vadd.f32 %v745, %v840
    %v842 = vpop.f32.mrb[0].mxu0
    %843 = vmatprep.mubr.f32.mxu0 0.0
    %844 = vmatmul.mubr.f32.gmra.mrb[0].mxu0 %v762
    %v845 = vpop.f32.mrb[0].mxu0
    %v846 = vadd.f32 %v750, %v845
    %v847 = vpop.f32.mrb[0].mxu0
    %848 = vdwg.mxu0
    %849 = vst [vmem:[%s17] sm:$0xff] %v831
    %850 = vst [vmem:[%s17 + $0x8] sm:$0xff] %v836
    %851 = vst [vmem:[%s17 + $0x10] sm:$0xff] %v841
    %852 = vst [vmem:[%s17 + $0x18] sm:$0xff] %v846
    // Predicated region
    $region70: #{ae_forward.1} parent=1 // pred_check
      _
    $region71: #{ae_forward.1} parent=1 // pred_check_branch
      %854 = sbr.rel (0) target = $region73
    $region72: #{ae_forward.1} parent=1 // pred_region
      _
    $region73: #{ae_forward.1} parent=1 // pred_fallthru
      _
    // Predicated region
    $region74: #{ae_forward.1} parent=1 // pred_check
      _
    $region75: #{ae_forward.1} parent=1 // pred_check_branch
      %856 = sbr.rel (0) target = $region77
    $region76: #{ae_forward.1} parent=1 // pred_region
      _
    $region77: #{ae_forward.1} parent=1 // pred_fallthru
      _
    // Predicated region
    $region78: #{ae_forward.1} parent=1 // pred_check
      _
    $region79: #{ae_forward.1} parent=1 // pred_check_branch
      %858 = sbr.rel (0) target = $region81
    $region80: #{ae_forward.1} parent=1 // pred_region
      _
    $region81: #{ae_forward.1} parent=1 // pred_fallthru
      _
    // Predicated region
    $region82: #{ae_forward.1} parent=1 // pred_check
      _
    $region83: #{ae_forward.1} parent=1 // pred_check_branch
      %860 = sbr.rel (0) target = $region85
    $region84: #{ae_forward.1} parent=1 // pred_region
      _
    $region85: #{ae_forward.1} parent=1 // pred_fallthru
      _
    %861 = vsyncpa [#allocation3], 1

</llo_original>
